<compile_context>
chip_gen: v6e
topology: v6e:2x2x1
jax: 0.10.0
libtpu: 0.0.40
codegen_flags: <defaults>
</compile_context>

<pallas_src>
import functools

import jax
import jax.numpy as jnp
from jax.experimental import pallas as pl
from jax.experimental.pallas import tpu as pltpu


_NEG = -1e30  # large-negative *finite* fill: exp() still underflows to 0 for
              # masked entries, but the online-softmax recurrence never sees
              # -inf - -inf = NaN (fully-masked rows stay finite until the
              # final 1/l, matching PyTorch's degenerate behaviour).


def _attention_kernel(nt_ref, q_ref, k_ref, v_ref, m_ref, o_ref,
                      m_scr, l_scr, acc_scr):
    # nt_ref : SMEM (nb,)   number of T tiles to process per batch block
    # q_ref  : (BB, Q)      query block (batch rows on sublanes)
    # k_ref  : (tT, BB, D)  key   block, native (T, B, D) layout
    # v_ref  : (tT, BB, D)  value block
    # m_ref  : (tT, BB, 1)  mask  block (float; 0 == masked)
    # o_ref  : (BB, D)      output block
    # scratch: m_scr/l_scr (BB, 1) f32, acc_scr (BB, D) f32
    b = pl.program_id(0)
    t = pl.program_id(1)

    @pl.when(t == 0)
    def _():
        m_scr[...] = jnp.full_like(m_scr, _NEG)
        l_scr[...] = jnp.zeros_like(l_scr)
        acc_scr[...] = jnp.zeros_like(acc_scr)

    @pl.when(t < nt_ref[b])        # skip tiles entirely past the valid range
    def _():
        q = q_ref[...].astype(jnp.float32)                      # (BB, Q)
        k = k_ref[...]                                          # (tT, BB, D)
        v = v_ref[...]                                          # (tT, BB, D)
        valid = m_ref[...] != 0.0                               # (tT, BB, 1)

        # Dot-product score in the native (T, B, D) layout:
        #   e[t, b] = sum_d q[b, d] * k[t, b, d]
        # (elementwise multiply + lane reduction; no transposes needed --
        #  the kernel is HBM-bandwidth bound, MXU utilization is irrelevant.)
        e = jnp.sum(q[None, :, :] * k, axis=-1, keepdims=True)  # (tT, BB, 1) f32
        e = jnp.where(valid, e, _NEG)

        # Online-softmax update across T tiles.
        m_prev = m_scr[...]                                     # (BB, 1)
        m_new = jnp.maximum(m_prev, jnp.max(e, axis=0))         # (BB, 1)
        alpha = jnp.exp(m_prev - m_new)                         # (BB, 1)
        p = jnp.where(valid, jnp.exp(e - m_new), 0.0)           # (tT, BB, 1)

        l_scr[...] = alpha * l_scr[...] + jnp.sum(p, axis=0)            # (BB, 1)
        acc_scr[...] = alpha * acc_scr[...] + jnp.sum(p * v, axis=0)    # (BB, D)
        m_scr[...] = m_new

    @pl.when(t == pl.num_programs(1) - 1)
    def _():
        # Normalize once on the (BB, D) accumulator (not the (tT, BB) weights).
        inv_l = pl.reciprocal(l_scr[...], approx=False)         # (BB, 1)
        o_ref[...] = (acc_scr[...] * inv_l).astype(o_ref.dtype)


def _round_up(x, m):
    return ((x + m - 1) // m) * m


@functools.partial(jax.jit, static_argnames=("block_b", "block_t"))
def global_soft_attention(query, key, value, mask=None, *,
                          block_b=8, block_t=128):
    """Pallas GlobalSoftAttention.forward (dim=0, 3-D key, dot-product score).

    query: (B, Q)   key/value: (T, B, D)   mask: (T, B) or None   out: (B, D)
    """
    T, B, D = key.shape
    Bq, Q = query.shape
    assert Bq == B and value.shape == key.shape
    # TODO(synk): score() is abstract in GlobalSoftAttention; the dot-product
    # score used here requires query_size == key_size.
    assert Q == D, "dot-product score requires query_size == key_size"

    if mask is None:
        mask = jnp.ones((T, B), dtype=jnp.float32)
    mask = mask.astype(jnp.float32)

    BB = min(block_b, _round_up(B, 8))          # batch rows per grid step
    tT = min(block_t, _round_up(T, 8))          # timesteps per grid step
    B_pad = _round_up(B, BB)
    T_pad = _round_up(T, tT)

    # Padding only happens when shapes are not already block-aligned; padded
    # timesteps / batch rows are masked out (mask padded with 0).
    if B_pad != B:
        query = jnp.pad(query, ((0, B_pad - B), (0, 0)))
    if B_pad != B or T_pad != T:
        pad_kv = ((0, T_pad - T), (0, B_pad - B), (0, 0))
        key = jnp.pad(key, pad_kv)
        value = jnp.pad(value, pad_kv)
        mask = jnp.pad(mask, ((0, T_pad - T), (0, B_pad - B)))

    nb, n_t = B_pad // BB, T_pad // tT

    # Per batch-block number of T tiles containing any unmasked entry;
    # scalar-prefetched so the kernel can skip DMA + compute past that point.
    valid_len = jnp.max(
        jnp.where(mask != 0.0,
                  jnp.arange(T_pad, dtype=jnp.int32)[:, None] + 1, 0),
        axis=0)                                                  # (B_pad,)
    blk_len = jnp.max(valid_len.reshape(nb, BB), axis=1)         # (nb,)
    nt_blocks = jnp.maximum((blk_len + tT - 1) // tT, 1).astype(jnp.int32)

    mask3 = mask.reshape(T_pad, B_pad, 1)      # free reshape; keeps (8,128) rules

    kv_map = lambda b, t, nt: (jnp.minimum(t, nt[b] - 1), b, 0)

    out = pl.pallas_call(
        _attention_kernel,
        out_shape=jax.ShapeDtypeStruct((B_pad, D), value.dtype),
        grid_spec=pltpu.PrefetchScalarGridSpec(
            num_scalar_prefetch=1,
            grid=(nb, n_t),
            in_specs=[
                pl.BlockSpec((BB, Q), lambda b, t, nt: (b, 0)),
                pl.BlockSpec((tT, BB, D), kv_map),
                pl.BlockSpec((tT, BB, D), kv_map),
                pl.BlockSpec((tT, BB, 1), kv_map),
            ],
            out_specs=pl.BlockSpec((BB, D), lambda b, t, nt: (b, 0)),
            scratch_shapes=[
                pltpu.VMEM((BB, 1), jnp.float32),   # running max m
                pltpu.VMEM((BB, 1), jnp.float32),   # running denom l
                pltpu.VMEM((BB, D), jnp.float32),   # running weighted value
            ],
        ),
        compiler_params=pltpu.CompilerParams(
            dimension_semantics=("parallel", "arbitrary"),
            # Covers double-buffered (tT=128, BB=8, D<=1024) f32 k/v tiles;
            # above v5e's 16 MiB default scoped limit, below v7x's 64 MiB VMEM.
            vmem_limit_bytes=48 * 1024 * 1024,
        ),
    )(nt_blocks, query, key, value, mask3)

    return out[:B]


def _reference(query, key, value, mask):
    # Pure-JAX mirror of GlobalSoftAttention.forward with dot-product score.
    e = jnp.sum(query[None, :, :] * key, axis=-1)          # (T, B)
    e = jnp.where(mask == 0, -jnp.inf, e)
    a = jax.nn.softmax(e, axis=0)                          # (T, B)
    return jnp.sum(a[..., None] * value, axis=0)           # (B, D)


if __name__ == "__main__":
    # Small deterministic example consistent with the module's docstring.
    T, B = 8, 2
    query_size = key_size = 32   # dot-product score requires Q == D

    rng = jax.random.PRNGKey(0)
    k1, k2, _ = jax.random.split(rng, 3)

    query = jax.random.normal(k1, (B, query_size), dtype=jnp.float32)
    key = jax.random.normal(k2, (T, B, key_size), dtype=jnp.float32)
    value = key  # value == key, as in the docstring example

    # Variable-length mask: batch 0 sees 5 steps, batch 1 sees all 8.
    lens = jnp.array([5, 8], dtype=jnp.int32)
    mask = (jnp.arange(T)[:, None] < lens[None, :]).astype(jnp.float32)  # (T, B)

    out = global_soft_attention(query, key, value, mask)
    out = jax.block_until_ready(out)

    ref = _reference(query, key, value, mask)
    assert out.shape == (B, key_size)
    assert bool(jnp.allclose(out, ref, atol=1e-5, rtol=1e-5)), "mismatch vs reference"

    print("KERNEL_OK")
</pallas_src>

<mosaic_0001>
module attributes {stable_mosaic.version = 11 : i64} {
  func.func @_attention_kernel(%arg0: i32, %arg1: i32, %arg2: memref<1xi32, #tpu.memory_space<smem>>, %arg3: memref<8x32xf32, #tpu.memory_space<vmem>>, %arg4: memref<8x8x32xf32, #tpu.memory_space<vmem>>, %arg5: memref<8x8x32xf32, #tpu.memory_space<vmem>>, %arg6: memref<8x8x1xf32, #tpu.memory_space<vmem>>, %arg7: memref<8x32xf32, #tpu.memory_space<vmem>>, %arg8: memref<8x1xf32, #tpu.memory_space<vmem>>, %arg9: memref<8x1xf32, #tpu.memory_space<vmem>>, %arg10: memref<8x32xf32, #tpu.memory_space<vmem>>) attributes {dimension_semantics = [#tpu.dimension_semantics<parallel>, #tpu.dimension_semantics<arbitrary>], iteration_bounds = array<i64: 1, 1>, scalar_prefetch = 1 : i64, scratch_operands = 3 : i64, tpu.core_type = #tpu.core_type<tc>, window_params = [{transform_indices = @transform_0, window_bounds = array<i64: 8, 32>}, {transform_indices = @transform_1, window_bounds = array<i64: 8, 8, 32>}, {transform_indices = @transform_2, window_bounds = array<i64: 8, 8, 32>}, {transform_indices = @transform_3, window_bounds = array<i64: 8, 8, 1>}, {transform_indices = @transform_4, window_bounds = array<i64: 8, 32>}]} {
    %c0_i32 = arith.constant 0 : i32
    %0 = arith.cmpi eq, %arg1, %c0_i32 : i32
    %1 = arith.extui %0 : i1 to i32
    %c0_i32_0 = arith.constant 0 : i32
    %2 = arith.cmpi ne, %1, %c0_i32_0 : i32
    scf.if %2 {
      %cst = arith.constant -1.000000e+30 : f32
      %11 = vector.broadcast %cst : f32 to vector<8x1xf32>
      %c0 = arith.constant 0 : index
      %c0_4 = arith.constant 0 : index
      %12 = vector.load %arg8[%c0, %c0_4] : memref<8x1xf32, #tpu.memory_space<vmem>>, vector<8x1xf32>
      tpu.vector_store %arg8[%c0, %c0_4], %11 {strides = array<i32>} : memref<8x1xf32, #tpu.memory_space<vmem>>, vector<8x1xf32>,
      %cst_5 = arith.constant 0.000000e+00 : f32
      %13 = vector.broadcast %cst_5 : f32 to vector<8x1xf32>
      %c0_6 = arith.constant 0 : index
      %c0_7 = arith.constant 0 : index
      %14 = vector.load %arg9[%c0_6, %c0_7] : memref<8x1xf32, #tpu.memory_space<vmem>>, vector<8x1xf32>
      tpu.vector_store %arg9[%c0_6, %c0_7], %13 {strides = array<i32>} : memref<8x1xf32, #tpu.memory_space<vmem>>, vector<8x1xf32>,
      %cst_8 = arith.constant 0.000000e+00 : f32
      %15 = vector.broadcast %cst_8 : f32 to vector<8x32xf32>
      %c0_9 = arith.constant 0 : index
      %c0_10 = arith.constant 0 : index
      %16 = vector.load %arg10[%c0_9, %c0_10] : memref<8x32xf32, #tpu.memory_space<vmem>>, vector<8x32xf32>
      tpu.vector_store %arg10[%c0_9, %c0_10], %15 {strides = array<i32>} : memref<8x32xf32, #tpu.memory_space<vmem>>, vector<8x32xf32>,
    } else {
    }
    %3 = arith.index_cast %arg0 : i32 to index
    %4 = memref.load %arg2[%3] : memref<1xi32, #tpu.memory_space<smem>>
    %5 = arith.cmpi slt, %arg1, %4 : i32
    %6 = arith.extui %5 : i1 to i32
    %c0_i32_1 = arith.constant 0 : i32
    %7 = arith.cmpi ne, %6, %c0_i32_1 : i32
    scf.if %7 {
      %c0 = arith.constant 0 : index
      %c0_4 = arith.constant 0 : index
      %11 = vector.load %arg3[%c0, %c0_4] : memref<8x32xf32, #tpu.memory_space<vmem>>, vector<8x32xf32>
      %c0_5 = arith.constant 0 : index
      %c0_6 = arith.constant 0 : index
      %c0_7 = arith.constant 0 : index
      %12 = vector.load %arg4[%c0_5, %c0_6, %c0_7] : memref<8x8x32xf32, #tpu.memory_space<vmem>>, vector<8x8x32xf32>
      %c0_8 = arith.constant 0 : index
      %c0_9 = arith.constant 0 : index
      %c0_10 = arith.constant 0 : index
      %13 = vector.load %arg5[%c0_8, %c0_9, %c0_10] : memref<8x8x32xf32, #tpu.memory_space<vmem>>, vector<8x8x32xf32>
      %c0_11 = arith.constant 0 : index
      %c0_12 = arith.constant 0 : index
      %c0_13 = arith.constant 0 : index
      %14 = vector.load %arg6[%c0_11, %c0_12, %c0_13] : memref<8x8x1xf32, #tpu.memory_space<vmem>>, vector<8x8x1xf32>
      %cst = arith.constant 0.000000e+00 : f32
      %15 = vector.broadcast %cst : f32 to vector<8x8x1xf32>
      %16 = arith.cmpf one, %14, %15 : vector<8x8x1xf32>
      %17 = vector.shape_cast %11 : vector<8x32xf32> to vector<1x8x32xf32>
      %18 = vector.broadcast %17 : vector<1x8x32xf32> to vector<8x8x32xf32>
      %19 = arith.mulf %18, %12 : vector<8x8x32xf32>
      %cst_14 = arith.constant dense<0.000000e+00> : vector<8x8xf32>
      %20 = vector.multi_reduction <add>, %19, %cst_14 [2] : vector<8x8x32xf32> to vector<8x8xf32>
      %21 = vector.shape_cast %20 : vector<8x8xf32> to vector<8x8x1xf32>
      %cst_15 = arith.constant -1.000000e+30 : f32
      %22 = vector.broadcast %cst_15 : f32 to vector<8x8x1xf32>
      %23 = arith.select %16, %21, %22 : vector<8x8x1xi1>, vector<8x8x1xf32>
      %c0_16 = arith.constant 0 : index
      %c0_17 = arith.constant 0 : index
      %24 = vector.load %arg8[%c0_16, %c0_17] : memref<8x1xf32, #tpu.memory_space<vmem>>, vector<8x1xf32>
      %cst_18 = arith.constant dense<0xFF800000> : vector<8x1xf32>
      %25 = vector.multi_reduction <maximumf>, %23, %cst_18 [0] : vector<8x8x1xf32> to vector<8x1xf32>
      %26 = arith.maximumf %24, %25 : vector<8x1xf32>
      %27 = arith.subf %24, %26 : vector<8x1xf32>
      %28 = math.exp %27 : vector<8x1xf32>
      %29 = vector.shape_cast %26 : vector<8x1xf32> to vector<1x8x1xf32>
      %30 = vector.broadcast %29 : vector<1x8x1xf32> to vector<8x8x1xf32>
      %31 = arith.subf %23, %30 : vector<8x8x1xf32>
      %32 = math.exp %31 : vector<8x8x1xf32>
      %cst_19 = arith.constant 0.000000e+00 : f32
      %33 = vector.broadcast %cst_19 : f32 to vector<8x8x1xf32>
      %34 = arith.select %16, %32, %33 : vector<8x8x1xi1>, vector<8x8x1xf32>
      %c0_20 = arith.constant 0 : index
      %c0_21 = arith.constant 0 : index
      %35 = vector.load %arg9[%c0_20, %c0_21] : memref<8x1xf32, #tpu.memory_space<vmem>>, vector<8x1xf32>
      %36 = arith.mulf %28, %35 : vector<8x1xf32>
      %cst_22 = arith.constant dense<0.000000e+00> : vector<8x1xf32>
      %37 = vector.multi_reduction <add>, %34, %cst_22 [0] : vector<8x8x1xf32> to vector<8x1xf32>
      %38 = arith.addf %36, %37 : vector<8x1xf32>
      %c0_23 = arith.constant 0 : index
      %c0_24 = arith.constant 0 : index
      %39 = vector.load %arg9[%c0_23, %c0_24] : memref<8x1xf32, #tpu.memory_space<vmem>>, vector<8x1xf32>
      tpu.vector_store %arg9[%c0_23, %c0_24], %38 {strides = array<i32>} : memref<8x1xf32, #tpu.memory_space<vmem>>, vector<8x1xf32>,
      %c0_25 = arith.constant 0 : index
      %c0_26 = arith.constant 0 : index
      %40 = vector.load %arg10[%c0_25, %c0_26] : memref<8x32xf32, #tpu.memory_space<vmem>>, vector<8x32xf32>
      %41 = vector.broadcast %28 : vector<8x1xf32> to vector<8x32xf32>
      %42 = arith.mulf %41, %40 : vector<8x32xf32>
      %43 = vector.broadcast %34 : vector<8x8x1xf32> to vector<8x8x32xf32>
      %44 = arith.mulf %43, %13 : vector<8x8x32xf32>
      %cst_27 = arith.constant dense<0.000000e+00> : vector<8x32xf32>
      %45 = vector.multi_reduction <add>, %44, %cst_27 [0] : vector<8x8x32xf32> to vector<8x32xf32>
      %46 = arith.addf %42, %45 : vector<8x32xf32>
      %c0_28 = arith.constant 0 : index
      %c0_29 = arith.constant 0 : index
      %47 = vector.load %arg10[%c0_28, %c0_29] : memref<8x32xf32, #tpu.memory_space<vmem>>, vector<8x32xf32>
      tpu.vector_store %arg10[%c0_28, %c0_29], %46 {strides = array<i32>} : memref<8x32xf32, #tpu.memory_space<vmem>>, vector<8x32xf32>,
      %c0_30 = arith.constant 0 : index
      %c0_31 = arith.constant 0 : index
      %48 = vector.load %arg8[%c0_30, %c0_31] : memref<8x1xf32, #tpu.memory_space<vmem>>, vector<8x1xf32>
      tpu.vector_store %arg8[%c0_30, %c0_31], %26 {strides = array<i32>} : memref<8x1xf32, #tpu.memory_space<vmem>>, vector<8x1xf32>,
    } else {
    }
    %c0_i32_2 = arith.constant 0 : i32
    %8 = arith.cmpi eq, %arg1, %c0_i32_2 : i32
    %9 = arith.extui %8 : i1 to i32
    %c0_i32_3 = arith.constant 0 : i32
    %10 = arith.cmpi ne, %9, %c0_i32_3 : i32
    scf.if %10 {
      %c0 = arith.constant 0 : index
      %c0_4 = arith.constant 0 : index
      %11 = vector.load %arg9[%c0, %c0_4] : memref<8x1xf32, #tpu.memory_space<vmem>>, vector<8x1xf32>
      %12 = tpu.reciprocal %11 : vector<8x1xf32> -> vector<8x1xf32>
      %c0_5 = arith.constant 0 : index
      %c0_6 = arith.constant 0 : index
      %13 = vector.load %arg10[%c0_5, %c0_6] : memref<8x32xf32, #tpu.memory_space<vmem>>, vector<8x32xf32>
      %14 = vector.broadcast %12 : vector<8x1xf32> to vector<8x32xf32>
      %15 = arith.mulf %13, %14 : vector<8x32xf32>
      %c0_7 = arith.constant 0 : index
      %c0_8 = arith.constant 0 : index
      %16 = vector.load %arg7[%c0_7, %c0_8] : memref<8x32xf32, #tpu.memory_space<vmem>>, vector<8x32xf32>
      tpu.vector_store %arg7[%c0_7, %c0_8], %15 {strides = array<i32>} : memref<8x32xf32, #tpu.memory_space<vmem>>, vector<8x32xf32>,
    } else {
    }
    return
  }
  func.func @transform_0(%arg0: i32, %arg1: i32, %arg2: memref<1xi32, #tpu.memory_space<smem>>) -> (i32, i32) {
    %c0_i32 = arith.constant 0 : i32
    %c0_i32_0 = arith.constant 0 : i32
    return %arg0, %c0_i32 : i32, i32
  }
  func.func @transform_1(%arg0: i32, %arg1: i32, %arg2: memref<1xi32, #tpu.memory_space<smem>>) -> (i32, i32, i32) {
    %0 = arith.index_cast %arg0 : i32 to index
    %1 = memref.load %arg2[%0] : memref<1xi32, #tpu.memory_space<smem>>
    %c1_i32 = arith.constant 1 : i32
    %2 = arith.subi %1, %c1_i32 : i32
    %3 = arith.minsi %arg1, %2 : i32
    %c0_i32 = arith.constant 0 : i32
    %c0_i32_0 = arith.constant 0 : i32
    return %3, %arg0, %c0_i32 : i32, i32, i32
  }
  func.func @transform_2(%arg0: i32, %arg1: i32, %arg2: memref<1xi32, #tpu.memory_space<smem>>) -> (i32, i32, i32) {
    %0 = arith.index_cast %arg0 : i32 to index
    %1 = memref.load %arg2[%0] : memref<1xi32, #tpu.memory_space<smem>>
    %c1_i32 = arith.constant 1 : i32
    %2 = arith.subi %1, %c1_i32 : i32
    %3 = arith.minsi %arg1, %2 : i32
    %c0_i32 = arith.constant 0 : i32
    %c0_i32_0 = arith.constant 0 : i32
    return %3, %arg0, %c0_i32 : i32, i32, i32
  }
  func.func @transform_3(%arg0: i32, %arg1: i32, %arg2: memref<1xi32, #tpu.memory_space<smem>>) -> (i32, i32, i32) {
    %0 = arith.index_cast %arg0 : i32 to index
    %1 = memref.load %arg2[%0] : memref<1xi32, #tpu.memory_space<smem>>
    %c1_i32 = arith.constant 1 : i32
    %2 = arith.subi %1, %c1_i32 : i32
    %3 = arith.minsi %arg1, %2 : i32
    %c0_i32 = arith.constant 0 : i32
    %c0_i32_0 = arith.constant 0 : i32
    return %3, %arg0, %c0_i32 : i32, i32, i32
  }
  func.func @transform_4(%arg0: i32, %arg1: i32, %arg2: memref<1xi32, #tpu.memory_space<smem>>) -> (i32, i32) {
    %c0_i32 = arith.constant 0 : i32
    %c0_i32_0 = arith.constant 0 : i32
    return %arg0, %c0_i32 : i32, i32
  }
}

</mosaic_0001>

<llo_original>
// kernel: global_soft_attention.1
$region0: #{global_soft_attention.1}
  #allocation0 [shape = 'u32[]', space=smem, size = 0x4, offset = 0x4, fixed_abs, tag = 'smem constant byte address 0x4 - core index']
  #allocation1 [shape = 'u32[144,128]{1,0:T(1,128)}', space=vmem, size = 0x12000, scoped, tag = 'internal scratch']
  #allocation2 [shape = 'f32[8,1]{1,0:T(8,128)}', space=vmem, size = 0x1000, scoped, tag = 'scratch operand']
  #allocation3 [shape = 'f32[8,1]{1,0:T(8,128)}', space=vmem, size = 0x1000, scoped, tag = 'scratch operand']
  #allocation4 [shape = 'f32[8,32]{1,0:T(8,128)}', space=vmem, size = 0x1000, scoped, tag = 'scratch operand']
  #allocation5 [shape = 's32[1]{0}', space=sflag, size = 0x4, scoped, tag = 'scoped memory for global_soft_attention.1']
  #allocation6 [shape = 's32[1]{0:T(128)S(6)}', space=smem, size = 0x200, scoped, tag = 'prefetched SMEM operand 0']
  %s0 = inlined_call_operand.<no memory space> [shape: s32[1], index: 0, kind: input, shape index: {}]
  %s1 = inlined_call_operand.vmem [shape: f32[8,32], index: 1, kind: input, shape index: {}]
  %s2 = inlined_call_operand.vmem [shape: f32[8,8,32], index: 2, kind: input, shape index: {}]
  %s3 = inlined_call_operand.vmem [shape: f32[8,8,32], index: 3, kind: input, shape index: {}]
  %s4 = inlined_call_operand.vmem [shape: f32[8,8,1], index: 4, kind: input, shape index: {}]
  %s5 = inlined_call_operand.vmem [shape: f32[8,32], index: 5, kind: output, shape index: {}]
  %s6 = sld [smem:[#allocation0]]
  $region38: #{global_soft_attention.1} parent=0
    _
  %s8 = ssub.s32 1, %s6
  %s9 = scalar_select 0, %s8, %s6
  %10 = sst [smem:[#allocation6]] %s0
  // Predicated region
  $region2: #{global_soft_attention.1} parent=0 // pred_check
    _
  $region3: #{global_soft_attention.1} parent=0 // pred_check_branch
    %12 = sbr.rel (0) target = $region5
  $region4: #{global_soft_attention.1} parent=0 // pred_region
    _
  $region5: #{global_soft_attention.1} parent=0 // pred_fallthru
    _
  // Predicated region
  $region6: #{global_soft_attention.1} parent=0 // pred_check
    _
  $region7: #{global_soft_attention.1} parent=0 // pred_check_branch
    %14 = sbr.rel (0) target = $region9
  $region8: #{global_soft_attention.1} parent=0 // pred_region
    %s15 = sld [smem:[#allocation6]]
    %s16 = ssub.s32 %s15, 1
    %p17 = scmp.lt.s32.totalorder 0, %s16
    %s18 = scalar_select %p17, 0, %s16
    %s19 = smul.u32 8, %s18
    %p20 = scmp.lt.s32.totalorder %s19, 7
    %s21 = scalar_select %p20, %s19, 7
    %s22 = smul.addr %s21, 8
    %s23 = scalar_lea.vmem %s2, %s22
    %s24 = sld [smem:[#allocation6]]
    %s25 = ssub.s32 %s24, 1
    %p26 = scmp.lt.s32.totalorder 0, %s25
    %s27 = scalar_select %p26, 0, %s25
    %s28 = smul.u32 8, %s27
  $region9: #{global_soft_attention.1} parent=0 // pred_fallthru
    _
  // Predicated region
  $region10: #{global_soft_attention.1} parent=0 // pred_check
    _
  $region11: #{global_soft_attention.1} parent=0 // pred_check_branch
    %30 = sbr.rel (0) target = $region13
  $region12: #{global_soft_attention.1} parent=0 // pred_region
    %s31 = sld [smem:[#allocation6]]
    %s32 = ssub.s32 %s31, 1
    %p33 = scmp.lt.s32.totalorder 0, %s32
    %s34 = scalar_select %p33, 0, %s32
    %s35 = smul.u32 8, %s34
    %p36 = scmp.lt.s32.totalorder %s35, 7
    %s37 = scalar_select %p36, %s35, 7
    %s38 = smul.addr %s37, 8
    %s39 = scalar_lea.vmem %s3, %s38
    %s40 = sld [smem:[#allocation6]]
    %s41 = ssub.s32 %s40, 1
    %p42 = scmp.lt.s32.totalorder 0, %s41
    %s43 = scalar_select %p42, 0, %s41
    %s44 = smul.u32 8, %s43
  $region13: #{global_soft_attention.1} parent=0 // pred_fallthru
    _
  // Predicated region
  $region14: #{global_soft_attention.1} parent=0 // pred_check
    _
  $region15: #{global_soft_attention.1} parent=0 // pred_check_branch
    %46 = sbr.rel (0) target = $region17
  $region16: #{global_soft_attention.1} parent=0 // pred_region
    %s47 = sld [smem:[#allocation6]]
    %s48 = ssub.s32 %s47, 1
    %p49 = scmp.lt.s32.totalorder 0, %s48
    %s50 = scalar_select %p49, 0, %s48
    %s51 = smul.u32 8, %s50
    %p52 = scmp.lt.s32.totalorder %s51, 7
    %s53 = scalar_select %p52, %s51, 7
    %s54 = smul.addr %s53, 8
    %s55 = scalar_lea.vmem %s4, %s54
    %s56 = sld [smem:[#allocation6]]
    %s57 = ssub.s32 %s56, 1
    %p58 = scmp.lt.s32.totalorder 0, %s57
    %s59 = scalar_select %p58, 0, %s57
    %s60 = smul.u32 8, %s59
  $region17: #{global_soft_attention.1} parent=0 // pred_fallthru
    _
  %s61 = sld [smem:[#allocation6]]
  %s62 = ssub.s32 %s61, 1
  %p63 = scmp.lt.s32.totalorder 0, %s62
  %s64 = scalar_select %p63, 0, %s62
  %s65 = smul.u32 8, %s64
  %p66 = scmp.lt.s32.totalorder %s65, 7
  %s67 = scalar_select %p66, %s65, 7
  %s68 = smul.addr %s67, 8
  %s69 = scalar_lea.vmem %s2, %s68
  %s70 = sld [smem:[#allocation6]]
  %s71 = ssub.s32 %s70, 1
  %p72 = scmp.lt.s32.totalorder 0, %s71
  %s73 = scalar_select %p72, 0, %s71
  %s74 = smul.u32 8, %s73
  %p75 = scmp.lt.s32.totalorder %s74, 7
  %s76 = scalar_select %p75, %s74, 7
  %s77 = smul.addr %s76, 8
  %s78 = scalar_lea.vmem %s3, %s77
  %s79 = sld [smem:[#allocation6]]
  %s80 = ssub.s32 %s79, 1
  %p81 = scmp.lt.s32.totalorder 0, %s80
  %s82 = scalar_select %p81, 0, %s80
  %s83 = smul.u32 8, %s82
  %p84 = scmp.lt.s32.totalorder %s83, 7
  %s85 = scalar_select %p84, %s83, 7
  %s86 = smul.addr %s85, 8
  %s87 = scalar_lea.vmem %s4, %s86
  %s88 = sld [smem:[#allocation6]]
  %s89 = ssub.s32 %s88, 1
  %p90 = scmp.lt.s32.totalorder 0, %s89
  %s91 = scalar_select %p90, 0, %s89
  %s92 = smul.u32 8, %s91
  %p93 = scmp.lt.s32.totalorder %s92, 7
  %s94 = scalar_select %p93, %s92, 7
  %s95 = smul.addr %s94, 8
  %s96 = scalar_lea.vmem %s2, %s95
  %s97 = sld [smem:[#allocation6]]
  %s98 = ssub.s32 %s97, 1
  %p99 = scmp.lt.s32.totalorder 0, %s98
  %s100 = scalar_select %p99, 0, %s98
  %s101 = smul.u32 8, %s100
  %s102 = sld [smem:[#allocation6]]
  %s103 = ssub.s32 %s102, 1
  %p104 = scmp.lt.s32.totalorder 0, %s103
  %s105 = scalar_select %p104, 0, %s103
  %s106 = smul.u32 8, %s105
  %p107 = scmp.lt.s32.totalorder %s106, 7
  %s108 = scalar_select %p107, %s106, 7
  %s109 = smul.addr %s108, 8
  %s110 = scalar_lea.vmem %s3, %s109
  %s111 = sld [smem:[#allocation6]]
  %s112 = ssub.s32 %s111, 1
  %p113 = scmp.lt.s32.totalorder 0, %s112
  %s114 = scalar_select %p113, 0, %s112
  %s115 = smul.u32 8, %s114
  %s116 = sld [smem:[#allocation6]]
  %s117 = ssub.s32 %s116, 1
  %p118 = scmp.lt.s32.totalorder 0, %s117
  %s119 = scalar_select %p118, 0, %s117
  %s120 = smul.u32 8, %s119
  %p121 = scmp.lt.s32.totalorder %s120, 7
  %s122 = scalar_select %p121, %s120, 7
  %s123 = smul.addr %s122, 8
  %s124 = scalar_lea.vmem %s4, %s123
  %s125 = sld [smem:[#allocation6]]
  %s126 = ssub.s32 %s125, 1
  %p127 = scmp.lt.s32.totalorder 0, %s126
  %s128 = scalar_select %p127, 0, %s126
  %s129 = smul.u32 8, %s128
  %p130 = scmp.eq.s32.totalorder 0, 0
  // Predicated region
  $region18: #{global_soft_attention.1} parent=0 // pred_check
    %p131 = pneg %p130
  $region19: #{global_soft_attention.1} parent=0 // pred_check_branch
    %133 = sbr.rel (%p131) target = $region21
  $region20: #{global_soft_attention.1} parent=0 // pred_region
    %vm134 = vcmask 7168
    %135 = vst.msk [vmem:[#allocation2] sm:$0xff] %vm134, -1e+30
    %136 = vst.msk [vmem:[#allocation3] sm:$0xff] %vm134, 0.0
    %vm137 = vcmask 261120
    %138 = vst.msk [vmem:[#allocation4] sm:$0xff] %vm137, 0.0
  $region21: #{global_soft_attention.1} parent=0 // pred_fallthru
    _
  %s139 = sld [smem:[#allocation6]]
  %p140 = scmp.lt.s32.totalorder 0, %s139
  // Predicated region
  $region22: #{global_soft_attention.1} parent=0 // pred_check
    %p141 = pneg %p140
  $region23: #{global_soft_attention.1} parent=0 // pred_check_branch
    %143 = sbr.rel (%p141) target = $region25
  $region24: #{global_soft_attention.1} parent=0 // pred_region
    %v144 = vld [vmem:[%s1] sm:$0xff]
    %v145 = vld [vmem:[%s96] sm:$0xff]
    %v146 = vld [vmem:[%s96 + $0x8] sm:$0xff]
    %v147 = vld [vmem:[%s96 + $0x10] sm:$0xff]
    %v148 = vld [vmem:[%s96 + $0x18] sm:$0xff]
    %v149 = vld [vmem:[%s96 + $0x20] sm:$0xff]
    %v150 = vld [vmem:[%s96 + $0x28] sm:$0xff]
    %v151 = vld [vmem:[%s96 + $0x30] sm:$0xff]
    %v152 = vld [vmem:[%s96 + $0x38] sm:$0xff]
    %v153 = vld [vmem:[%s110] sm:$0xff]
    %v154 = vld [vmem:[%s110 + $0x8] sm:$0xff]
    %v155 = vld [vmem:[%s110 + $0x10] sm:$0xff]
    %v156 = vld [vmem:[%s110 + $0x18] sm:$0xff]
    %v157 = vld [vmem:[%s110 + $0x20] sm:$0xff]
    %v158 = vld [vmem:[%s110 + $0x28] sm:$0xff]
    %v159 = vld [vmem:[%s110 + $0x30] sm:$0xff]
    %v160 = vld [vmem:[%s110 + $0x38] sm:$0xff]
    %v161 = vld [vmem:[%s124] sm:$0xff]
    %v162 = vld [vmem:[%s124 + $0x8] sm:$0xff]
    %v163 = vld [vmem:[%s124 + $0x10] sm:$0xff]
    %v164 = vld [vmem:[%s124 + $0x18] sm:$0xff]
    %v165 = vld [vmem:[%s124 + $0x20] sm:$0xff]
    %v166 = vld [vmem:[%s124 + $0x28] sm:$0xff]
    %v167 = vld [vmem:[%s124 + $0x30] sm:$0xff]
    %v168 = vld [vmem:[%s124 + $0x38] sm:$0xff]
    %vm169 = vcmp.ne.f32.partialorder %v161, 0.0
    %vm170 = vcmp.ne.f32.partialorder %v162, 0.0
    %vm171 = vcmp.ne.f32.partialorder %v163, 0.0
    %vm172 = vcmp.ne.f32.partialorder %v164, 0.0
    %vm173 = vcmp.ne.f32.partialorder %v165, 0.0
    %vm174 = vcmp.ne.f32.partialorder %v166, 0.0
    %vm175 = vcmp.ne.f32.partialorder %v167, 0.0
    %vm176 = vcmp.ne.f32.partialorder %v168, 0.0
    %v177 = vmul.f32 %v144, %v145
    %v178 = vmul.f32 %v144, %v146
    %v179 = vmul.f32 %v144, %v147
    %v180 = vmul.f32 %v144, %v148
    %v181 = vmul.f32 %v144, %v149
    %v182 = vmul.f32 %v144, %v150
    %v183 = vmul.f32 %v144, %v151
    %v184 = vmul.f32 %v144, %v152
    %vm185 = vcmask 261120
    %v186 = vsel %vm185, %v177, 0.0
    %187 = vadd.xlane.f32.xlu0 %v186
    %v188 = vpop.xlane.xlu0 %187
    %v189 = vsel %vm185, %v178, 0.0
    %190 = vadd.xlane.f32.xlu0 %v189
    %v191 = vpop.xlane.xlu0 %190
    %v192 = vsel %vm185, %v179, 0.0
    %193 = vadd.xlane.f32.xlu0 %v192
    %v194 = vpop.xlane.xlu0 %193
    %v195 = vsel %vm185, %v180, 0.0
    %196 = vadd.xlane.f32.xlu0 %v195
    %v197 = vpop.xlane.xlu0 %196
    %v198 = vsel %vm185, %v181, 0.0
    %199 = vadd.xlane.f32.xlu0 %v198
    %v200 = vpop.xlane.xlu0 %199
    %v201 = vsel %vm185, %v182, 0.0
    %202 = vadd.xlane.f32.xlu0 %v201
    %v203 = vpop.xlane.xlu0 %202
    %v204 = vsel %vm185, %v183, 0.0
    %205 = vadd.xlane.f32.xlu0 %v204
    %v206 = vpop.xlane.xlu0 %205
    %v207 = vsel %vm185, %v184, 0.0
    %208 = vadd.xlane.f32.xlu0 %v207
    %v209 = vpop.xlane.xlu0 %208
    %v210 = vsel %vm169, %v188, -1e+30
    %v211 = vsel %vm170, %v191, -1e+30
    %v212 = vsel %vm171, %v194, -1e+30
    %v213 = vsel %vm172, %v197, -1e+30
    %v214 = vsel %vm173, %v200, -1e+30
    %v215 = vsel %vm174, %v203, -1e+30
    %v216 = vsel %vm175, %v206, -1e+30
    %v217 = vsel %vm176, %v209, -1e+30
    %v218 = vld [vmem:[#allocation2] sm:$0xff]
    %vm219 = vcmask 7168
    %v220 = vsel %vm219, %v210, -inf
    %v221 = vsel %vm219, %v211, -inf
    %v222 = vsel %vm219, %v212, -inf
    %v223 = vsel %vm219, %v213, -inf
    %v224 = vsel %vm219, %v214, -inf
    %v225 = vmax.f32 %v220, %v224
    %v226 = vsel %vm219, %v215, -inf
    %v227 = vmax.f32 %v221, %v226
    %v228 = vsel %vm219, %v216, -inf
    %v229 = vmax.f32 %v222, %v228
    %v230 = vsel %vm219, %v217, -inf
    %v231 = vmax.f32 %v223, %v230
    %v232 = vmax.f32 %v225, %v227
    %v233 = vmax.f32 %v229, %v231
    %v234 = vmax.f32 %v232, %v233
    %v235 = vmax.f32 %v218, %v234
    %v236 = vsub.f32 %v218, %v235
    %v237 = vmul.f32 %v236, 1.442695
    %v238 = vpow.pop %v237
    %v239 = vsub.f32 %v210, %v235
    %v240 = vsub.f32 %v211, %v235
    %v241 = vsub.f32 %v212, %v235
    %v242 = vsub.f32 %v213, %v235
    %v243 = vsub.f32 %v214, %v235
    %v244 = vsub.f32 %v215, %v235
    %v245 = vsub.f32 %v216, %v235
    %v246 = vsub.f32 %v217, %v235
    %v247 = vmul.f32 %v239, 1.442695
    %v248 = vpow.pop %v247
    %v249 = vmul.f32 %v240, 1.442695
    %v250 = vpow.pop %v249
    %v251 = vmul.f32 %v241, 1.442695
    %v252 = vpow.pop %v251
    %v253 = vmul.f32 %v242, 1.442695
    %v254 = vpow.pop %v253
    %v255 = vmul.f32 %v243, 1.442695
    %v256 = vpow.pop %v255
    %v257 = vmul.f32 %v244, 1.442695
    %v258 = vpow.pop %v257
    %v259 = vmul.f32 %v245, 1.442695
    %v260 = vpow.pop %v259
    %v261 = vmul.f32 %v246, 1.442695
    %v262 = vpow.pop %v261
    %v263 = vsel %vm169, %v248, 0.0
    %v264 = vsel %vm170, %v250, 0.0
    %v265 = vsel %vm171, %v252, 0.0
    %v266 = vsel %vm172, %v254, 0.0
    %v267 = vsel %vm173, %v256, 0.0
    %v268 = vsel %vm174, %v258, 0.0
    %v269 = vsel %vm175, %v260, 0.0
    %v270 = vsel %vm176, %v262, 0.0
    %v271 = vld [vmem:[#allocation3] sm:$0xff]
    %v272 = vmul.f32 %v238, %v271
    %v273 = vsel %vm219, %v263, 0.0
    %v274 = vsel %vm219, %v264, 0.0
    %v275 = vadd.f32 %v273, %v274
    %v276 = vsel %vm219, %v265, 0.0
    %v277 = vadd.f32 %v275, %v276
    %v278 = vsel %vm219, %v266, 0.0
    %v279 = vadd.f32 %v277, %v278
    %v280 = vsel %vm219, %v267, 0.0
    %v281 = vadd.f32 %v279, %v280
    %v282 = vsel %vm219, %v268, 0.0
    %v283 = vadd.f32 %v281, %v282
    %v284 = vsel %vm219, %v269, 0.0
    %v285 = vadd.f32 %v283, %v284
    %v286 = vsel %vm219, %v270, 0.0
    %v287 = vadd.f32 %v285, %v286
    %v288 = vadd.f32 %v272, %v287
    %289 = vst.msk [vmem:[#allocation3] sm:$0xff] %vm219, %v288
    %v290 = vld [vmem:[#allocation4] sm:$0xff]
    %292 = vset.pattern.permute.xlu0 0
    %293 = vperm.xlu0 %292, %v238
    %v294 = vpop.permute.xlu0 %293
    %v296 = vmul.f32 %v294, %v290
    %298 = vset.pattern.permute.xlu0 0
    %299 = vperm.xlu0 %298, %v263
    %v300 = vpop.permute.xlu0 %299
    %303 = vset.pattern.permute.xlu0 0
    %304 = vperm.xlu0 %303, %v264
    %v305 = vpop.permute.xlu0 %304
    %308 = vset.pattern.permute.xlu0 0
    %309 = vperm.xlu0 %308, %v265
    %v310 = vpop.permute.xlu0 %309
    %313 = vset.pattern.permute.xlu0 0
    %314 = vperm.xlu0 %313, %v266
    %v315 = vpop.permute.xlu0 %314
    %318 = vset.pattern.permute.xlu0 0
    %319 = vperm.xlu0 %318, %v267
    %v320 = vpop.permute.xlu0 %319
    %323 = vset.pattern.permute.xlu0 0
    %324 = vperm.xlu0 %323, %v268
    %v325 = vpop.permute.xlu0 %324
    %328 = vset.pattern.permute.xlu0 0
    %329 = vperm.xlu0 %328, %v269
    %v330 = vpop.permute.xlu0 %329
    %333 = vset.pattern.permute.xlu0 0
    %334 = vperm.xlu0 %333, %v270
    %v335 = vpop.permute.xlu0 %334
    %v337 = vmul.f32 %v300, %v153
    %v338 = vmul.f32 %v305, %v154
    %v339 = vmul.f32 %v310, %v155
    %v340 = vmul.f32 %v315, %v156
    %v341 = vmul.f32 %v320, %v157
    %v342 = vmul.f32 %v325, %v158
    %v343 = vmul.f32 %v330, %v159
    %v344 = vmul.f32 %v335, %v160
    %v345 = vsel %vm185, %v337, 0.0
    %v346 = vsel %vm185, %v338, 0.0
    %v347 = vadd.f32 %v345, %v346
    %v348 = vsel %vm185, %v339, 0.0
    %v349 = vadd.f32 %v347, %v348
    %v350 = vsel %vm185, %v340, 0.0
    %v351 = vadd.f32 %v349, %v350
    %v352 = vsel %vm185, %v341, 0.0
    %v353 = vadd.f32 %v351, %v352
    %v354 = vsel %vm185, %v342, 0.0
    %v355 = vadd.f32 %v353, %v354
    %v356 = vsel %vm185, %v343, 0.0
    %v357 = vadd.f32 %v355, %v356
    %v358 = vsel %vm185, %v344, 0.0
    %v359 = vadd.f32 %v357, %v358
    %v360 = vadd.f32 %v296, %v359
    %361 = vst.msk [vmem:[#allocation4] sm:$0xff] %vm185, %v360
    %362 = vst.msk [vmem:[#allocation2] sm:$0xff] %vm219, %v235
  $region25: #{global_soft_attention.1} parent=0 // pred_fallthru
    _
  // Predicated region
  $region26: #{global_soft_attention.1} parent=0 // pred_check
    %p363 = pneg %p130
  $region27: #{global_soft_attention.1} parent=0 // pred_check_branch
    %365 = sbr.rel (%p363) target = $region29
  $region28: #{global_soft_attention.1} parent=0 // pred_region
    %v366 = vld [vmem:[#allocation3] sm:$0xff]
    %v367 = vrcp.pop %v366
    %v368 = vld [vmem:[#allocation4] sm:$0xff]
    %370 = vset.pattern.permute.xlu0 0
    %371 = vperm.xlu0 %370, %v367
    %v372 = vpop.permute.xlu0 %371
    %v374 = vmul.f32 %v368, %v372
    %vm375 = vcmask 261120
    %376 = vst.msk [vmem:[%s5] sm:$0xff] %vm375, %v374
  $region29: #{global_soft_attention.1} parent=0 // pred_fallthru
    _
  // Predicated region
  $region30: #{global_soft_attention.1} parent=0 // pred_check
    _
  $region31: #{global_soft_attention.1} parent=0 // pred_check_branch
    %378 = sbr.rel (0) target = $region33
  $region32: #{global_soft_attention.1} parent=0 // pred_region
    _
  $region33: #{global_soft_attention.1} parent=0 // pred_fallthru
    _
  // Predicated region
  $region34: #{global_soft_attention.1} parent=0 // pred_check
    _
  $region35: #{global_soft_attention.1} parent=0 // pred_check_branch
    %380 = sbr.rel (0) target = $region37
  $region36: #{global_soft_attention.1} parent=0 // pred_region
    _
  $region37: #{global_soft_attention.1} parent=0 // pred_fallthru
    _

</llo_original>
